<compile_context>
chip_gen: v7x
topology: tpu7x:2x2x1
jax: 0.10.0
libtpu: 0.0.40
codegen_flags: <defaults>
</compile_context>

<pallas_src>
import math

import jax
import jax.numpy as jnp
from jax.experimental import pallas as pl
from jax.experimental.pallas import tpu as pltpu


def _split_linear_kernel(x_ref, w_ref, b_ref, o_ref):
    # x_ref: (J, K), w_ref: (K, Lp), b_ref: (1, Lp), o_ref: (J, Lp)
    acc = jnp.dot(x_ref[...], w_ref[...], preferred_element_type=jnp.float32)
    o_ref[...] = (acc + b_ref[...]).astype(o_ref.dtype)


@jax.jit
def split_balanced_linear(x, weights, bias):
    """y[g] = x[g] @ weights[g] + bias[g], for every group g, in one kernel."""
    G, J, K = x.shape
    G2, K2, L = weights.shape
    assert G == G2 and K == K2 and bias.shape == (G, 1, L)

    # Pad the output-feature dim to a multiple of 128 so output stores are
    # lane-dense (unmasked). Zero-padded weight/bias columns produce zeros
    # that are sliced away in the wrapper.
    LANE = 128
    Lp = ((L + LANE - 1) // LANE) * LANE
    if Lp != L:
        pad = Lp - L
        weights_p = jnp.pad(weights, ((0, 0), (0, 0), (0, pad)))
        bias_p = jnp.pad(bias, ((0, 0), (0, 0), (0, pad)))
    else:
        weights_p, bias_p = weights, bias

    out_p = pl.pallas_call(
        _split_linear_kernel,
        out_shape=jax.ShapeDtypeStruct((G, J, Lp), x.dtype),
        grid_spec=pltpu.PrefetchScalarGridSpec(
            num_scalar_prefetch=0,
            grid=(G,),  # one grid step per split/group; groups are independent
            in_specs=[
                pl.BlockSpec((None, J, K), lambda g: (g, 0, 0)),
                pl.BlockSpec((None, K, Lp), lambda g: (g, 0, 0)),
                pl.BlockSpec((None, 1, Lp), lambda g: (g, 0, 0)),
            ],
            out_specs=pl.BlockSpec((None, J, Lp), lambda g: (g, 0, 0)),
        ),
        compiler_params=pltpu.CompilerParams(
            dimension_semantics=("parallel",),   # megacore sharding on v7x
            vmem_limit_bytes=32 * 1024 * 1024,   # safe on v7x's 64 MiB VMEM
        ),
    )(x, weights_p, bias_p)

    return out_p[..., :L] if Lp != L else out_p


def init_params(key, input_size, output_size, num_splits=2):
    """Mirror the PyTorch module's init on the 3-D weight tensor (2, K, L):
       kaiming_uniform_(a=sqrt(5)) -> bound = gain * sqrt(3 / fan_in),
       torch fan_in for a (2, K, L) tensor = size(1) * prod(shape[2:]) = K * L,
       bias ~ U(-1/sqrt(fan_in), 1/sqrt(fan_in)).
    """
    kw, kb = jax.random.split(key)
    fan_in = input_size * output_size                # K * L
    gain = math.sqrt(2.0 / (1.0 + 5.0))              # a = sqrt(5)
    w_bound = gain * math.sqrt(3.0 / fan_in)         # == 1/sqrt(K*L)
    weights = jax.random.uniform(
        kw, (num_splits, input_size, output_size), jnp.float32,
        minval=-w_bound, maxval=w_bound)
    b_bound = 1.0 / math.sqrt(fan_in)
    bias = jax.random.uniform(
        kb, (num_splits, 1, output_size), jnp.float32,
        minval=-b_bound, maxval=b_bound)
    return weights, bias


if __name__ == "__main__":
    key = jax.random.PRNGKey(0)
    kx, kp = jax.random.split(key)

    G, J, K, L = 2, 8, 32, 64  # splits=2, seq=8, input_size=32, output_size=64
    x = jax.random.normal(kx, (G, J, K), dtype=jnp.float32)
    weights, bias = init_params(kp, K, L, num_splits=G)

    out = split_balanced_linear(x, weights, bias)
    jax.block_until_ready(out)

    # sanity check against plain JAX reference of the torch forward
    ref = jnp.einsum("ijk,ikl->ijl", x, weights) + bias
    assert out.shape == (G, J, L)
    assert jnp.allclose(out, ref, atol=1e-5, rtol=1e-5)

    print("KERNEL_OK")
</pallas_src>

<mosaic_0001>
module attributes {stable_mosaic.version = 11 : i64} {
  func.func @_split_linear_kernel(%arg0: i32, %arg1: memref<1x8x32xf32, #tpu.memory_space<vmem>>, %arg2: memref<1x32x128xf32, #tpu.memory_space<vmem>>, %arg3: memref<1x1x128xf32, #tpu.memory_space<vmem>>, %arg4: memref<1x8x128xf32, #tpu.memory_space<vmem>>) attributes {dimension_semantics = [#tpu.dimension_semantics<parallel>], iteration_bounds = array<i64: 2>, scalar_prefetch = 0 : i64, scratch_operands = 0 : i64, tpu.core_type = #tpu.core_type<tc>, window_params = [{transform_indices = @transform_0, window_bounds = array<i64: 1, 8, 32>}, {transform_indices = @transform_1, window_bounds = array<i64: 1, 32, 128>}, {transform_indices = @transform_2, window_bounds = array<i64: 1, 1, 128>}, {transform_indices = @transform_3, window_bounds = array<i64: 1, 8, 128>}]} {
    %c0 = arith.constant 0 : index
    %c0_0 = arith.constant 0 : index
    %c0_1 = arith.constant 0 : index
    %0 = vector.load %arg1[%c0, %c0_0, %c0_1] : memref<1x8x32xf32, #tpu.memory_space<vmem>>, vector<1x8x32xf32>
    %1 = vector.shape_cast %0 : vector<1x8x32xf32> to vector<8x32xf32>
    %c0_2 = arith.constant 0 : index
    %c0_3 = arith.constant 0 : index
    %c0_4 = arith.constant 0 : index
    %2 = vector.load %arg2[%c0_2, %c0_3, %c0_4] : memref<1x32x128xf32, #tpu.memory_space<vmem>>, vector<1x32x128xf32>
    %3 = vector.shape_cast %2 : vector<1x32x128xf32> to vector<32x128xf32>
    %cst = arith.constant dense<0.000000e+00> : vector<8x128xf32>
    %4 = tpu.matmul %1, %3, %cst {dimension_numbers = #tpu.dot_dimension_numbers<[1], [0], [0], [1], [0, 0, 1, 1], [], []>} : vector<8x32xf32>, vector<32x128xf32>, vector<8x128xf32> -> vector<8x128xf32>
    %c0_5 = arith.constant 0 : index
    %c0_6 = arith.constant 0 : index
    %c0_7 = arith.constant 0 : index
    %5 = vector.load %arg3[%c0_5, %c0_6, %c0_7] : memref<1x1x128xf32, #tpu.memory_space<vmem>>, vector<1x1x128xf32>
    %6 = vector.shape_cast %5 : vector<1x1x128xf32> to vector<1x128xf32>
    %7 = vector.broadcast %6 : vector<1x128xf32> to vector<8x128xf32>
    %8 = arith.addf %4, %7 : vector<8x128xf32>
    %c0_8 = arith.constant 0 : index
    %c0_9 = arith.constant 0 : index
    %c0_10 = arith.constant 0 : index
    %9 = vector.load %arg4[%c0_8, %c0_9, %c0_10] : memref<1x8x128xf32, #tpu.memory_space<vmem>>, vector<1x8x128xf32>
    %10 = vector.shape_cast %9 : vector<1x8x128xf32> to vector<8x128xf32>
    %11 = vector.shape_cast %8 : vector<8x128xf32> to vector<1x8x128xf32>
    tpu.vector_store %arg4[%c0_8, %c0_9, %c0_10], %11 {strides = array<i32>} : memref<1x8x128xf32, #tpu.memory_space<vmem>>, vector<1x8x128xf32>,
    return
  }
  func.func @transform_0(%arg0: i32) -> (i32, i32, i32) {
    %c0_i32 = arith.constant 0 : i32
    %c0_i32_0 = arith.constant 0 : i32
    %c0_i32_1 = arith.constant 0 : i32
    return %arg0, %c0_i32, %c0_i32_0 : i32, i32, i32
  }
  func.func @transform_1(%arg0: i32) -> (i32, i32, i32) {
    %c0_i32 = arith.constant 0 : i32
    %c0_i32_0 = arith.constant 0 : i32
    %c0_i32_1 = arith.constant 0 : i32
    return %arg0, %c0_i32, %c0_i32_0 : i32, i32, i32
  }
  func.func @transform_2(%arg0: i32) -> (i32, i32, i32) {
    %c0_i32 = arith.constant 0 : i32
    %c0_i32_0 = arith.constant 0 : i32
    %c0_i32_1 = arith.constant 0 : i32
    return %arg0, %c0_i32, %c0_i32_0 : i32, i32, i32
  }
  func.func @transform_3(%arg0: i32) -> (i32, i32, i32) {
    %c0_i32 = arith.constant 0 : i32
    %c0_i32_0 = arith.constant 0 : i32
    %c0_i32_1 = arith.constant 0 : i32
    return %arg0, %c0_i32, %c0_i32_0 : i32, i32, i32
  }
}

</mosaic_0001>

<llo_original>
// kernel: split_balanced_linear.1
$region0: #{split_balanced_linear.1}
  #allocation0 [shape = 'u32[]', space=smem, size = 0x4, offset = 0x4, fixed_abs, tag = 'smem constant byte address 0x4 - core index']
  #allocation1 [shape = 'u32[144,128]{1,0:T(1,128)}', space=vmem, size = 0x12000, scoped, tag = 'internal scratch']
  %s0 = inlined_call_operand.vmem [shape: f32[2,8,32], index: 0, kind: input, shape index: {}]
  %s1 = inlined_call_operand.vmem [shape: f32[2,32,128], index: 1, kind: input, shape index: {}]
  %s2 = inlined_call_operand.vmem [shape: f32[2,1,128], index: 2, kind: input, shape index: {}]
  %s3 = inlined_call_operand.hbm [shape: f32[2,8,128], index: 3, kind: output, shape index: {}]
  %s4 = sld [smem:[#allocation0]]
  $region45: #{split_balanced_linear.1} parent=0
    _
  %s6 = ssub.s32 1, %s4
  %s7 = scalar_select 0, %s6, %s4
  $region1: #{split_balanced_linear.1} parent=0
    #allocation2 [shape = 'u8[8192]{0}', space=vmem, size = 0x2000, scoped, tag = 'output window, operand 0']
    #allocation3 [shape = 's32[2]{0}', space=sflag, size = 0x8, scoped, tag = 'scoped memory for split_balanced_linear.1']
    %8 = vsyncpa [#allocation3], 0
    %s9 = scalar_lea.sflag [#allocation3], 1
    %10 = vsyncpa %s9, 0
    loop: start=0, step=1, limit=4
    $region2: #{split_balanced_linear.1} parent=1 // loop_pre_header
      _
    $region3: #{split_balanced_linear.1} parent=1 // loop_header
      %s12 = sphi 0, %s16
      %p13 = scmp.ge.s32.totalorder %s12, 4
      %s22 = sphi 0, %s24
      %s25 = sphi 0, %s22
      %s26 = sphi 0, %s25
      %s42 = sphi 0, %s26
      %s48 = sphi 0, %s50
      %s51 = sphi 0, %s48
      %s52 = sphi 0, %s51
      %s68 = sphi 0, %s52
      %s74 = sphi 0, %s76
      %s77 = sphi 0, %s74
      %s78 = sphi 0, %s77
      %s94 = sphi 0, %s78
      %s100 = sphi 0, %s102
      %s103 = sphi 0, %s100
      %s104 = sphi 0, %s103
      %s120 = sphi 0, %s104
    $region4: #{split_balanced_linear.1} parent=1 // loop_header_branch
      %15 = sbr.rel (%p13) target = $region8
    $region5: #{split_balanced_linear.1} parent=1 // loop_body
      %s17 = ssub.s32 %s12, 1
      %s18 = ssub.s32 %s12, 2
      %s19 = sadd.s32 %s12, 1
      %s20 = ssub.s32 %s12, %s19
      %p21 = scmp.eq.s32.totalorder %s20, 0
      %s23 = sadd.s32 %s22, 1
      %s24 = scalar_select %p21, %s22, %s23
      %p27 = pneg %p21
      %p28 = scmp.eq.s32.totalorder %s12, 1
      %p29 = por %p27, %p28
      %p30 = scmp.ne.s32.totalorder %s22, %s25
      %p31 = scmp.eq.s32.totalorder %s12, 0
      %p32 = por %p30, %p31
      %p33 = scmp.ne.s32.totalorder %s22, %s25
      %p34 = scmp.eq.s32.totalorder %s17, 1
      %p35 = por %p33, %p34
      %p36 = scmp.ne.s32.totalorder %s25, %s26
      %p37 = scmp.eq.s32.totalorder %s17, 0
      %p38 = por %p36, %p37
      %p39 = scmp.ne.s32.totalorder %s25, %s26
      %p40 = scmp.eq.s32.totalorder %s18, 1
      %p41 = por %p39, %p40
      %p43 = scmp.ne.s32.totalorder %s26, %s42
      %p44 = scmp.eq.s32.totalorder %s18, 0
      %p45 = por %p43, %p44
      %s46 = ssub.s32 %s12, %s19
      %p47 = scmp.eq.s32.totalorder %s46, 0
      %s49 = sadd.s32 %s48, 1
      %s50 = scalar_select %p47, %s48, %s49
      %p53 = pneg %p47
      %p54 = scmp.eq.s32.totalorder %s12, 1
      %p55 = por %p53, %p54
      %p56 = scmp.ne.s32.totalorder %s48, %s51
      %p57 = scmp.eq.s32.totalorder %s12, 0
      %p58 = por %p56, %p57
      %p59 = scmp.ne.s32.totalorder %s48, %s51
      %p60 = scmp.eq.s32.totalorder %s17, 1
      %p61 = por %p59, %p60
      %p62 = scmp.ne.s32.totalorder %s51, %s52
      %p63 = scmp.eq.s32.totalorder %s17, 0
      %p64 = por %p62, %p63
      %p65 = scmp.ne.s32.totalorder %s51, %s52
      %p66 = scmp.eq.s32.totalorder %s18, 1
      %p67 = por %p65, %p66
      %p69 = scmp.ne.s32.totalorder %s52, %s68
      %p70 = scmp.eq.s32.totalorder %s18, 0
      %p71 = por %p69, %p70
      %s72 = ssub.s32 %s12, %s19
      %p73 = scmp.eq.s32.totalorder %s72, 0
      %s75 = sadd.s32 %s74, 1
      %s76 = scalar_select %p73, %s74, %s75
      %p79 = pneg %p73
      %p80 = scmp.eq.s32.totalorder %s12, 1
      %p81 = por %p79, %p80
      %p82 = scmp.ne.s32.totalorder %s74, %s77
      %p83 = scmp.eq.s32.totalorder %s12, 0
      %p84 = por %p82, %p83
      %p85 = scmp.ne.s32.totalorder %s74, %s77
      %p86 = scmp.eq.s32.totalorder %s17, 1
      %p87 = por %p85, %p86
      %p88 = scmp.ne.s32.totalorder %s77, %s78
      %p89 = scmp.eq.s32.totalorder %s17, 0
      %p90 = por %p88, %p89
      %p91 = scmp.ne.s32.totalorder %s77, %s78
      %p92 = scmp.eq.s32.totalorder %s18, 1
      %p93 = por %p91, %p92
      %p95 = scmp.ne.s32.totalorder %s78, %s94
      %p96 = scmp.eq.s32.totalorder %s18, 0
      %p97 = por %p95, %p96
      %s98 = ssub.s32 %s12, %s19
      %p99 = scmp.eq.s32.totalorder %s98, 0
      %s101 = sadd.s32 %s100, 1
      %s102 = scalar_select %p99, %s100, %s101
      %p105 = pneg %p99
      %p106 = scmp.eq.s32.totalorder %s12, 1
      %p107 = por %p105, %p106
      %p108 = scmp.ne.s32.totalorder %s100, %s103
      %p109 = scmp.eq.s32.totalorder %s12, 0
      %p110 = por %p108, %p109
      %p111 = scmp.ne.s32.totalorder %s100, %s103
      %p112 = scmp.eq.s32.totalorder %s17, 1
      %p113 = por %p111, %p112
      %p114 = scmp.ne.s32.totalorder %s103, %s104
      %p115 = scmp.eq.s32.totalorder %s17, 0
      %p116 = por %p114, %p115
      %p117 = scmp.ne.s32.totalorder %s103, %s104
      %p118 = scmp.eq.s32.totalorder %s18, 1
      %p119 = por %p117, %p118
      %p121 = scmp.ne.s32.totalorder %s104, %s120
      %p122 = scmp.eq.s32.totalorder %s18, 0
      %p123 = por %p121, %p122
      %p124 = scmp.le.s32.totalorder 1, %s12
      %p125 = scmp.lt.s32.totalorder %s12, 3
      %p126 = pnand %p124, %p125
      %p127 = pneg %p126
      // Predicated region
      $region9: #{split_balanced_linear.1} parent=5 // pred_check
        _
      $region10: #{split_balanced_linear.1} parent=5 // pred_check_branch
        %129 = sbr.rel (%p126) target = $region12
      $region11: #{split_balanced_linear.1} parent=5 // pred_region
        %s130 = ssub.s32 %s12, 1
      $region12: #{split_balanced_linear.1} parent=5 // pred_fallthru
        _
      %p131 = scmp.lt.s32.totalorder %s12, 2
      // Predicated region
      $region13: #{split_balanced_linear.1} parent=5 // pred_check
        %p132 = pneg %p131
      $region14: #{split_balanced_linear.1} parent=5 // pred_check_branch
        %134 = sbr.rel (%p132) target = $region16
      $region15: #{split_balanced_linear.1} parent=5 // pred_region
        // Predicated region
        $region17: #{split_balanced_linear.1} parent=15 // pred_check
          %p135 = pneg %p32
        $region18: #{split_balanced_linear.1} parent=15 // pred_check_branch
          %137 = sbr.rel (%p135) target = $region20
        $region19: #{split_balanced_linear.1} parent=15 // pred_region
          %p138 = scmp.lt.s32.totalorder %s12, 1
          %s139 = scalar_select %p138, %s12, 1
          %s140 = smul.addr %s139, 8
          %s141 = scalar_lea.vmem %s0, %s140
        $region20: #{split_balanced_linear.1} parent=15 // pred_fallthru
          _
        // Predicated region
        $region21: #{split_balanced_linear.1} parent=15 // pred_check
          %p142 = pneg %p58
        $region22: #{split_balanced_linear.1} parent=15 // pred_check_branch
          %144 = sbr.rel (%p142) target = $region24
        $region23: #{split_balanced_linear.1} parent=15 // pred_region
          %p145 = scmp.lt.s32.totalorder %s12, 1
          %s146 = scalar_select %p145, %s12, 1
          %s147 = smul.addr %s146, 4
          %s148 = smul.addr %s147, 8
          %s149 = scalar_lea.vmem %s1, %s148
        $region24: #{split_balanced_linear.1} parent=15 // pred_fallthru
          _
        // Predicated region
        $region25: #{split_balanced_linear.1} parent=15 // pred_check
          %p150 = pneg %p84
        $region26: #{split_balanced_linear.1} parent=15 // pred_check_branch
          %152 = sbr.rel (%p150) target = $region28
        $region27: #{split_balanced_linear.1} parent=15 // pred_region
          %p153 = scmp.lt.s32.totalorder %s12, 1
          %s154 = scalar_select %p153, %s12, 1
          %s155 = scalar_lea.vmem %s2, %s154
        $region28: #{split_balanced_linear.1} parent=15 // pred_fallthru
          _
      $region16: #{split_balanced_linear.1} parent=5 // pred_fallthru
        _
      %p156 = scmp.le.s32.totalorder 1, %s12
      %p157 = scmp.lt.s32.totalorder %s12, 3
      %p158 = pnand %p156, %p157
      %p159 = pneg %p158
      // Predicated region
      $region29: #{split_balanced_linear.1} parent=5 // pred_check
        _
      $region30: #{split_balanced_linear.1} parent=5 // pred_check_branch
        %161 = sbr.rel (%p158) target = $region32
      $region31: #{split_balanced_linear.1} parent=5 // pred_region
        %s162 = ssub.s32 %s12, 1
        %p163 = scmp.lt.s32.totalorder %s17, 1
        %s164 = scalar_select %p163, %s17, 1
        %s165 = smul.addr %s164, 8
        %s166 = scalar_lea.vmem %s0, %s165
        %p167 = pneg %p38
        %p168 = pneg %p35
        %p169 = scmp.lt.s32.totalorder %s17, 1
        %s170 = scalar_select %p169, %s17, 1
        %s171 = smul.addr %s170, 4
        %s172 = smul.addr %s171, 8
        %s173 = scalar_lea.vmem %s1, %s172
        %p174 = pneg %p64
        %p175 = pneg %p61
        %p176 = scmp.lt.s32.totalorder %s17, 1
        %s177 = scalar_select %p176, %s17, 1
        %s178 = scalar_lea.vmem %s2, %s177
        %p179 = pneg %p90
        %p180 = pneg %p87
        %p181 = pneg %p116
        %p182 = pneg %p113
        %s183 = sand.u32 %s103, 1
        %s184 = scalar_lea.sflag [#allocation3], %s183
        %s185 = sand.u32 %s103, 1
        %s186 = smul.addr %s185, 8
        %s187 = scalar_lea.vmem [#allocation2], %s186
        %p188 = scmp.lt.s32.totalorder %s17, 1
        %s189 = scalar_select %p188, %s17, 1
        %s190 = smul.addr %s189, 8
        %s191 = scalar_lea.vmem %s0, %s190
        %p192 = scmp.lt.s32.totalorder %s17, 1
        %s193 = scalar_select %p192, %s17, 1
        %s194 = smul.addr %s193, 4
        %s195 = smul.addr %s194, 8
        %s196 = scalar_lea.vmem %s1, %s195
        %p197 = scmp.lt.s32.totalorder %s17, 1
        %s198 = scalar_select %p197, %s17, 1
        %s199 = scalar_lea.vmem %s2, %s198
        %v200 = vld [vmem:[%s191] sm:$0xff]
        %v201 = vld [vmem:[%s196] sm:$0xff]
        %v202 = vld [vmem:[%s196 + $0x8] sm:$0xff]
        %v203 = vld [vmem:[%s196 + $0x10] sm:$0xff]
        %v204 = vld [vmem:[%s196 + $0x18] sm:$0xff]
        %v205 = vld [vmem:[%s199] sm:$0x1]
        %v207 = vlaneseq
        %v208 = vshrl.u32 %v207, 7
        %v209 = vsub.s32 0, %v208
        %v210 = vrot.slane %v205, %v209
        %vm212 = vcmask 261120
        %v214 = vsel %vm212, %v200, 0
        %216 = vmatprep.subr.mxu0 0.0
        %217 = vmatpush1.msra.mxu0 %v201
        %218 = vmatprep.subr.mxu0 0.0
        %219 = vmatpush1.msra.mxu0 %v202
        %220 = vmatprep.subr.mxu0 0.0
        %221 = vmatpush1.msra.mxu0 %v203
        %222 = vmatprep.subr.mxu0 0.0
        %223 = vmatpush1.msra.mxu0 %v204
        %224 = vmatprep.subr.mxu0 0.0
        %225 = vmatpush1.msra.mxu0 0.0
        %226 = vmatprep.subr.mxu0 0.0
        %227 = vmatpush1.msra.mxu0 0.0
        %228 = vmatprep.subr.mxu0 0.0
        %229 = vmatpush1.msra.mxu0 0.0
        %230 = vmatprep.subr.mxu0 0.0
        %231 = vmatpush1.msra.mxu0 0.0
        %232 = vmatprep.subr.mxu0 0.0
        %233 = vmatpush1.msra.mxu0 0.0
        %234 = vmatprep.subr.mxu0 0.0
        %235 = vmatpush1.msra.mxu0 0.0
        %236 = vmatprep.subr.mxu0 0.0
        %237 = vmatpush1.msra.mxu0 0.0
        %238 = vmatprep.subr.mxu0 0.0
        %239 = vmatpush1.msra.mxu0 0.0
        %240 = vmatprep.subr.mxu0 0.0
        %241 = vmatpush1.msra.mxu0 0.0
        %242 = vmatprep.subr.mxu0 0.0
        %243 = vmatpush1.msra.mxu0 0.0
        %244 = vmatprep.subr.mxu0 0.0
        %245 = vmatpush1.msra.mxu0 0.0
        %246 = vmatprep.subr.mxu0 0.0
        %247 = vmatpush1.msra.mxu0 0.0
        %248 = vmatprep.subr.mxu0 0.0
        %249 = vmatpush1.msra.mxu0 0.0
        %250 = vmatprep.subr.mxu0 0.0
        %251 = vmatpush1.msra.mxu0 0.0
        %252 = vmatprep.subr.mxu0 0.0
        %253 = vmatpush1.msra.mxu0 0.0
        %254 = vmatprep.subr.mxu0 0.0
        %255 = vmatpush1.msra.mxu0 0.0
        %256 = vmatprep.subr.mxu0 0.0
        %257 = vmatpush1.msra.mxu0 0.0
        %258 = vmatprep.subr.mxu0 0.0
        %259 = vmatpush1.msra.mxu0 0.0
        %260 = vmatprep.subr.mxu0 0.0
        %261 = vmatpush1.msra.mxu0 0.0
        %262 = vmatprep.subr.mxu0 0.0
        %263 = vmatpush1.msra.mxu0 0.0
        %264 = vmatprep.subr.mxu0 0.0
        %265 = vmatpush1.msra.mxu0 0.0
        %266 = vmatprep.subr.mxu0 0.0
        %267 = vmatpush1.msra.mxu0 0.0
        %268 = vmatprep.subr.mxu0 0.0
        %269 = vmatpush1.msra.mxu0 0.0
        %270 = vmatprep.subr.mxu0 0.0
        %271 = vmatpush1.msra.mxu0 0.0
        %272 = vmatprep.subr.mxu0 0.0
        %273 = vmatpush1.msra.mxu0 0.0
        %274 = vmatprep.subr.mxu0 0.0
        %275 = vmatpush1.msra.mxu0 0.0
        %276 = vmatprep.subr.mxu0 0.0
        %277 = vmatpush1.msra.mxu0 0.0
        %278 = vmatprep.subr.mxu0 0.0
        %279 = vmatpush1.msra.mxu0 0.0
        %280 = vmatprep.mubr.f32.mxu0 0.0
        %281 = vmatmul.mubr.f32.gmra.mrb[0].mxu0 %v214
        %v282 = vpop.f32.mrb[0].mxu0
        %v283 = vadd.f32 %v210, %v282
        %v284 = vpop.f32.mrb[0].mxu0
        %285 = vdwg.mxu0
        %286 = vst [vmem:[%s187] sm:$0xff] %v283
        %s287 = sand.u32 %s103, 1
        %s288 = scalar_lea.sflag [#allocation3], %s287
        %s289 = sand.u32 %s103, 1
        %s290 = smul.addr %s289, 8
        %s291 = scalar_lea.vmem [#allocation2], %s290
        // Predicated region
        $region33: #{split_balanced_linear.1} parent=31 // pred_check
          %p292 = pneg %p113
        $region34: #{split_balanced_linear.1} parent=31 // pred_check_branch
          %294 = sbr.rel (%p292) target = $region36
        $region35: #{split_balanced_linear.1} parent=31 // pred_region
          %s296 = ssub.s32 128, 128
          %297 = vsyncadd %s288, %s296
          %s298 = smul.addr %s17, 128
          %s299 = scalar_lea.hbm %s3, %s298
          %s301 = sshll.u32 %s291, 4
          %s302 = int_to_ptr.vmem [resolvable:$true] %s301
          %304 = dma.vmem_to_hbm [thread:$0]  %s302, 128, %s299, %s288
        $region36: #{split_balanced_linear.1} parent=31 // pred_fallthru
          _
      $region32: #{split_balanced_linear.1} parent=5 // pred_fallthru
        _
      %p305 = scmp.le.s32.totalorder 2, %s12
      // Predicated region
      $region37: #{split_balanced_linear.1} parent=5 // pred_check
        %p306 = pneg %p305
      $region38: #{split_balanced_linear.1} parent=5 // pred_check_branch
        %308 = sbr.rel (%p306) target = $region40
      $region39: #{split_balanced_linear.1} parent=5 // pred_region
        %s309 = ssub.s32 %s12, 2
        // Predicated region
        $region41: #{split_balanced_linear.1} parent=39 // pred_check
          %p310 = pneg %p119
        $region42: #{split_balanced_linear.1} parent=39 // pred_check_branch
          %312 = sbr.rel (%p310) target = $region44
        $region43: #{split_balanced_linear.1} parent=39 // pred_region
          %s313 = sand.u32 %s104, 1
          %s314 = scalar_lea.sflag [#allocation3], %s313
          %s315 = sand.u32 %s104, 1
          %s316 = smul.addr %s315, 8
          %s317 = scalar_lea.vmem [#allocation2], %s316
          %318 = dma.done %s314, 128
        $region44: #{split_balanced_linear.1} parent=39 // pred_fallthru
          _
      $region40: #{split_balanced_linear.1} parent=5 // pred_fallthru
        _
    $region6: #{split_balanced_linear.1} parent=1 // loop_footer
      %s16 = sadd.s32 1, %s12
    $region7: #{split_balanced_linear.1} parent=1 // loop_footer_branch
      %11 = sbr.rel target = $region3
    $region8: #{split_balanced_linear.1} parent=1 // loop_exit
      _
    %319 = vsyncpa [#allocation3], 1
    %s320 = scalar_lea.sflag [#allocation3], 1
    %321 = vsyncpa %s320, 1

</llo_original>
